<compile_context>
chip_gen: v7x
topology: tpu7x:2x2x1
jax: 0.10.0
libtpu: 0.0.40
codegen_flags: <defaults>
</compile_context>

<pallas_src>
import jax
import jax.numpy as jnp
from jax.experimental import pallas as pl
from jax.experimental.pallas import tpu as pltpu

N_TIMES_IN_DAY = 288
N_DAYS_IN_WEEK = 7
LOOKBACK = 12  # len(torch.arange(12)) -> t_window must be 12

# Max flattened-tile size per channel (f32 elements).  Output block is
# 3x this (~3 MiB at the cap); with double buffering total VMEM stays ~8 MiB,
# comfortably inside every generation's scoped limit (incl. v7x's 64 MiB).
_MAX_TILE_ELEMS = 256 * 1024  # multiple of 128 -> lane-aligned tiles


def _aux_info_kernel(tid_ref, diw_ref, x_ref, o_ref):
    # tid_ref, diw_ref: SMEM (B,) int32 scalar-prefetch refs
    # x_ref: VMEM block (1, 1, NT_tile) float32
    # o_ref: VMEM block (1, 3, NT_tile) float32
    b = pl.program_id(0)
    j = pl.program_id(1)
    nt_tile = x_ref.shape[-1]

    # Global flat index along the (N*T) axis; kidx = T-1-t reproduces the
    # flip in the PyTorch reference (flat = n*T + t, so t = flat % T).
    lin = jax.lax.broadcasted_iota(jnp.int32, (1, nt_tile), 1) + j * nt_tile
    kidx = (LOOKBACK - 1) - (lin % LOOKBACK)

    tid_raw = tid_ref[b]
    # Scalar-unit mods once per grid step; keeps the vector path mod-free and
    # makes the conditional-subtract below exact for any non-negative inputs.
    tid_m = tid_raw % N_TIMES_IN_DAY
    diw_m = diw_ref[b] % N_DAYS_IN_WEEK

    # ((tid + 288 - kidx) % 288) / 288, via one conditional subtract + const mul.
    v = tid_m + N_TIMES_IN_DAY - kidx                    # in [277, 575]
    v = jnp.where(v >= N_TIMES_IN_DAY, v - N_TIMES_IN_DAY, v)
    tid_back = v.astype(jnp.float32) * (1.0 / N_TIMES_IN_DAY)

    # cross-day mask uses the raw tid (matches PyTorch exactly).
    cross = (tid_raw - kidx < 0).astype(jnp.int32)
    w = diw_m + N_DAYS_IN_WEEK - cross                   # in [6, 13]
    w = jnp.where(w >= N_DAYS_IN_WEEK, w - N_DAYS_IN_WEEK, w)
    diw_back = w.astype(jnp.float32) * (1.0 / N_DAYS_IN_WEEK)

    o_ref[0, 0:1, :] = x_ref[0]       # channel 0: passthrough
    o_ref[0, 1:2, :] = tid_back       # channel 1: time-in-day
    o_ref[0, 2:3, :] = diw_back       # channel 2: day-in-week


def aux_info_adder(x: jax.Array, tid: jax.Array, diw: jax.Array) -> jax.Array:
    """x: (B, N, T) float32, tid/diw: (B,) ints -> (B, 3, N, T) float32."""
    batch_size, n_series, t_window = x.shape
    assert t_window == LOOKBACK, "lookback window must be 12 (arange(12))"

    nt = n_series * t_window
    nt_tile = nt if nt <= _MAX_TILE_ELEMS else _MAX_TILE_ELEMS
    num_tiles = pl.cdiv(nt, nt_tile)

    # Free reshapes (contiguous row-major): present a lane-dense trailing axis.
    x_flat = x.reshape(batch_size, 1, nt)
    tid = tid.astype(jnp.int32)
    diw = diw.astype(jnp.int32)

    grid_spec = pltpu.PrefetchScalarGridSpec(
        num_scalar_prefetch=2,  # tid, diw live in SMEM
        grid=(batch_size, num_tiles),
        in_specs=[
            pl.BlockSpec((1, 1, nt_tile), lambda b, j, tid, diw: (b, 0, j)),
        ],
        out_specs=pl.BlockSpec(
            (1, 3, nt_tile), lambda b, j, tid, diw: (b, 0, j)
        ),
    )

    out_flat = pl.pallas_call(
        _aux_info_kernel,
        out_shape=jax.ShapeDtypeStruct((batch_size, 3, nt), jnp.float32),
        grid_spec=grid_spec,
        compiler_params=pltpu.CompilerParams(
            dimension_semantics=("parallel", "parallel"),
            vmem_limit_bytes=48 * 1024 * 1024,
        ),
        cost_estimate=pl.CostEstimate(
            flops=6 * batch_size * nt,
            transcendentals=0,
            bytes_accessed=16 * batch_size * nt,  # 4 B read + 12 B written / elem
        ),
    )(tid, diw, x_flat)

    # Free reshape back to the PyTorch output layout.
    return out_flat.reshape(batch_size, 3, n_series, t_window)


def _reference(x, tid, diw):
    """Pure-JAX reference mirroring the PyTorch forward."""
    B, N, T = x.shape
    lookback = jnp.arange(T, dtype=jnp.int32)
    tid_e = tid[:, None, None].astype(jnp.int32)          # (B,1,1)
    diw_e = diw[:, None, None].astype(jnp.int32)
    tid_back = jnp.flip((tid_e + N_TIMES_IN_DAY - lookback) % N_TIMES_IN_DAY,
                        axis=-1).astype(jnp.float32) / N_TIMES_IN_DAY
    tid_back = jnp.broadcast_to(tid_back, (B, N, T))
    cross = (jnp.flip(tid_e - lookback, axis=-1) < 0).astype(jnp.int32)
    diw_back = ((diw_e + N_DAYS_IN_WEEK - cross) % N_DAYS_IN_WEEK).astype(
        jnp.float32) / N_DAYS_IN_WEEK
    diw_back = jnp.broadcast_to(diw_back, (B, N, T))
    return jnp.stack([x, tid_back, diw_back], axis=1)


if __name__ == "__main__":
    key = jax.random.PRNGKey(0)
    kx, kt, kd = jax.random.split(key, 3)

    B, N, T = 2, 8, 12
    x = jax.random.normal(kx, (B, N, T), dtype=jnp.float32)
    tid = jax.random.randint(kt, (B,), 0, N_TIMES_IN_DAY, dtype=jnp.int32)
    diw = jax.random.randint(kd, (B,), 0, N_DAYS_IN_WEEK, dtype=jnp.int32)

    out = aux_info_adder(x, tid, diw)
    jax.block_until_ready(out)

    ref = _reference(x, tid, diw)
    assert out.shape == (B, 3, N, T)
    assert jnp.allclose(out, ref, atol=1e-6), "mismatch vs reference"

    print("KERNEL_OK")
</pallas_src>

<mosaic_0001>
module attributes {stable_mosaic.version = 11 : i64} {
  func.func @_aux_info_kernel(%arg0: i32, %arg1: i32, %arg2: memref<2xi32, #tpu.memory_space<smem>>, %arg3: memref<2xi32, #tpu.memory_space<smem>>, %arg4: memref<1x1x96xf32, #tpu.memory_space<vmem>>, %arg5: memref<1x3x96xf32, #tpu.memory_space<vmem>>) attributes {dimension_semantics = [#tpu.dimension_semantics<parallel>, #tpu.dimension_semantics<parallel>], iteration_bounds = array<i64: 2, 1>, scalar_prefetch = 2 : i64, scratch_operands = 0 : i64, tpu.core_type = #tpu.core_type<tc>, window_params = [{transform_indices = @transform_0, window_bounds = array<i64: 1, 1, 96>}, {transform_indices = @transform_1, window_bounds = array<i64: 1, 3, 96>}]} {
    %0 = tpu.iota {dimensions = array<i32: 1>} : vector<1x96xi32>
    %c96_i32 = arith.constant 96 : i32
    %1 = arith.muli %arg1, %c96_i32 : i32
    %2 = vector.broadcast %1 : i32 to vector<1x96xi32>
    %3 = arith.addi %0, %2 : vector<1x96xi32>
    %c12_i32 = arith.constant 12 : i32
    %c0_i32 = arith.constant 0 : i32
    %4 = arith.cmpi eq, %c12_i32, %c0_i32 : i32
    %c1_i32 = arith.constant 1 : i32
    %5 = arith.select %4, %c1_i32, %c12_i32 : i32
    %6 = vector.broadcast %5 : i32 to vector<1x96xi32>
    %7 = arith.remsi %3, %6 : vector<1x96xi32>
    %c0_i32_0 = arith.constant 0 : i32
    %8 = vector.broadcast %c0_i32_0 : i32 to vector<1x96xi32>
    %9 = arith.cmpi ne, %7, %8 : vector<1x96xi32>
    %c0_i32_1 = arith.constant 0 : i32
    %10 = vector.broadcast %c0_i32_1 : i32 to vector<1x96xi32>
    %11 = arith.cmpi slt, %7, %10 : vector<1x96xi32>
    %c0_i32_2 = arith.constant 0 : i32
    %12 = arith.cmpi slt, %5, %c0_i32_2 : i32
    %13 = vector.broadcast %12 : i1 to vector<1x96xi1>
    %14 = vector.broadcast %13 : vector<1x96xi1> to vector<1x96xi1>
    %15 = arith.xori %11, %14 : vector<1x96xi1>
    %16 = arith.andi %15, %9 : vector<1x96xi1>
    %17 = vector.broadcast %5 : i32 to vector<1x96xi32>
    %18 = arith.addi %7, %17 : vector<1x96xi32>
    %19 = arith.select %16, %18, %7 : vector<1x96xi1>, vector<1x96xi32>
    %c11_i32 = arith.constant 11 : i32
    %20 = vector.broadcast %c11_i32 : i32 to vector<1x96xi32>
    %21 = arith.subi %20, %19 : vector<1x96xi32>
    %22 = arith.index_cast %arg0 : i32 to index
    %23 = memref.load %arg2[%22] : memref<2xi32, #tpu.memory_space<smem>>
    %c288_i32 = arith.constant 288 : i32
    %c0_i32_3 = arith.constant 0 : i32
    %24 = arith.cmpi eq, %c288_i32, %c0_i32_3 : i32
    %c1_i32_4 = arith.constant 1 : i32
    %25 = arith.select %24, %c1_i32_4, %c288_i32 : i32
    %26 = arith.remsi %23, %25 : i32
    %c0_i32_5 = arith.constant 0 : i32
    %27 = arith.cmpi ne, %26, %c0_i32_5 : i32
    %c0_i32_6 = arith.constant 0 : i32
    %28 = arith.cmpi slt, %26, %c0_i32_6 : i32
    %c0_i32_7 = arith.constant 0 : i32
    %29 = arith.cmpi slt, %25, %c0_i32_7 : i32
    %30 = arith.xori %28, %29 : i1
    %31 = arith.andi %30, %27 : i1
    %32 = arith.addi %26, %25 : i32
    %33 = arith.select %31, %32, %26 : i32
    %34 = arith.index_cast %arg0 : i32 to index
    %35 = memref.load %arg3[%34] : memref<2xi32, #tpu.memory_space<smem>>
    %c7_i32 = arith.constant 7 : i32
    %c0_i32_8 = arith.constant 0 : i32
    %36 = arith.cmpi eq, %c7_i32, %c0_i32_8 : i32
    %c1_i32_9 = arith.constant 1 : i32
    %37 = arith.select %36, %c1_i32_9, %c7_i32 : i32
    %38 = arith.remsi %35, %37 : i32
    %c0_i32_10 = arith.constant 0 : i32
    %39 = arith.cmpi ne, %38, %c0_i32_10 : i32
    %c0_i32_11 = arith.constant 0 : i32
    %40 = arith.cmpi slt, %38, %c0_i32_11 : i32
    %c0_i32_12 = arith.constant 0 : i32
    %41 = arith.cmpi slt, %37, %c0_i32_12 : i32
    %42 = arith.xori %40, %41 : i1
    %43 = arith.andi %42, %39 : i1
    %44 = arith.addi %38, %37 : i32
    %45 = arith.select %43, %44, %38 : i32
    %c288_i32_13 = arith.constant 288 : i32
    %46 = arith.addi %33, %c288_i32_13 : i32
    %47 = vector.broadcast %46 : i32 to vector<1x96xi32>
    %48 = arith.subi %47, %21 : vector<1x96xi32>
    %c288_i32_14 = arith.constant 288 : i32
    %49 = vector.broadcast %c288_i32_14 : i32 to vector<1x96xi32>
    %50 = arith.cmpi sge, %48, %49 : vector<1x96xi32>
    %c288_i32_15 = arith.constant 288 : i32
    %51 = vector.broadcast %c288_i32_15 : i32 to vector<1x96xi32>
    %52 = arith.subi %48, %51 : vector<1x96xi32>
    %53 = arith.select %50, %52, %48 : vector<1x96xi1>, vector<1x96xi32>
    %54 = arith.sitofp %53 : vector<1x96xi32> to vector<1x96xf32>
    %cst = arith.constant 0.00347222225 : f32
    %55 = vector.broadcast %cst : f32 to vector<1x96xf32>
    %56 = arith.mulf %54, %55 : vector<1x96xf32>
    %57 = vector.broadcast %23 : i32 to vector<1x96xi32>
    %58 = arith.subi %57, %21 : vector<1x96xi32>
    %c0_i32_16 = arith.constant 0 : i32
    %59 = vector.broadcast %c0_i32_16 : i32 to vector<1x96xi32>
    %60 = arith.cmpi slt, %58, %59 : vector<1x96xi32>
    %61 = arith.extui %60 : vector<1x96xi1> to vector<1x96xi32>
    %c7_i32_17 = arith.constant 7 : i32
    %62 = arith.addi %45, %c7_i32_17 : i32
    %63 = vector.broadcast %62 : i32 to vector<1x96xi32>
    %64 = arith.subi %63, %61 : vector<1x96xi32>
    %c7_i32_18 = arith.constant 7 : i32
    %65 = vector.broadcast %c7_i32_18 : i32 to vector<1x96xi32>
    %66 = arith.cmpi sge, %64, %65 : vector<1x96xi32>
    %c7_i32_19 = arith.constant 7 : i32
    %67 = vector.broadcast %c7_i32_19 : i32 to vector<1x96xi32>
    %68 = arith.subi %64, %67 : vector<1x96xi32>
    %69 = arith.select %66, %68, %64 : vector<1x96xi1>, vector<1x96xi32>
    %70 = arith.sitofp %69 : vector<1x96xi32> to vector<1x96xf32>
    %cst_20 = arith.constant 0.142857149 : f32
    %71 = vector.broadcast %cst_20 : f32 to vector<1x96xf32>
    %72 = arith.mulf %70, %71 : vector<1x96xf32>
    %c0 = arith.constant 0 : index
    %c0_21 = arith.constant 0 : index
    %c0_22 = arith.constant 0 : index
    %73 = vector.load %arg4[%c0, %c0_21, %c0_22] : memref<1x1x96xf32, #tpu.memory_space<vmem>>, vector<1x1x96xf32>
    %74 = vector.shape_cast %73 : vector<1x1x96xf32> to vector<1x96xf32>
    %c0_23 = arith.constant 0 : index
    %c0_24 = arith.constant 0 : index
    %c0_25 = arith.constant 0 : index
    %75 = vector.load %arg5[%c0_23, %c0_24, %c0_25] : memref<1x3x96xf32, #tpu.memory_space<vmem>>, vector<1x1x96xf32>
    %76 = vector.shape_cast %75 : vector<1x1x96xf32> to vector<1x96xf32>
    %77 = vector.shape_cast %74 : vector<1x96xf32> to vector<1x1x96xf32>
    tpu.vector_store %arg5[%c0_23, %c0_24, %c0_25], %77 {strides = array<i32>} : memref<1x3x96xf32, #tpu.memory_space<vmem>>, vector<1x1x96xf32>,
    %c0_26 = arith.constant 0 : index
    %c1 = arith.constant 1 : index
    %c0_27 = arith.constant 0 : index
    %78 = vector.load %arg5[%c0_26, %c1, %c0_27] : memref<1x3x96xf32, #tpu.memory_space<vmem>>, vector<1x1x96xf32>
    %79 = vector.shape_cast %78 : vector<1x1x96xf32> to vector<1x96xf32>
    %80 = vector.shape_cast %56 : vector<1x96xf32> to vector<1x1x96xf32>
    tpu.vector_store %arg5[%c0_26, %c1, %c0_27], %80 {strides = array<i32>} : memref<1x3x96xf32, #tpu.memory_space<vmem>>, vector<1x1x96xf32>,
    %c0_28 = arith.constant 0 : index
    %c2 = arith.constant 2 : index
    %c0_29 = arith.constant 0 : index
    %81 = vector.load %arg5[%c0_28, %c2, %c0_29] : memref<1x3x96xf32, #tpu.memory_space<vmem>>, vector<1x1x96xf32>
    %82 = vector.shape_cast %81 : vector<1x1x96xf32> to vector<1x96xf32>
    %83 = vector.shape_cast %72 : vector<1x96xf32> to vector<1x1x96xf32>
    tpu.vector_store %arg5[%c0_28, %c2, %c0_29], %83 {strides = array<i32>} : memref<1x3x96xf32, #tpu.memory_space<vmem>>, vector<1x1x96xf32>,
    return
  }
  func.func @transform_0(%arg0: i32, %arg1: i32, %arg2: memref<2xi32, #tpu.memory_space<smem>>, %arg3: memref<2xi32, #tpu.memory_space<smem>>) -> (i32, i32, i32) {
    %c0_i32 = arith.constant 0 : i32
    %c0_i32_0 = arith.constant 0 : i32
    return %arg0, %c0_i32, %arg1 : i32, i32, i32
  }
  func.func @transform_1(%arg0: i32, %arg1: i32, %arg2: memref<2xi32, #tpu.memory_space<smem>>, %arg3: memref<2xi32, #tpu.memory_space<smem>>) -> (i32, i32, i32) {
    %c0_i32 = arith.constant 0 : i32
    %c0_i32_0 = arith.constant 0 : i32
    return %arg0, %c0_i32, %arg1 : i32, i32, i32
  }
}

</mosaic_0001>

<llo_original>
// kernel: tpu_custom_call.1
$region0: #{tpu_custom_call.1}
  #allocation0 [shape = 'u32[]', space=smem, size = 0x4, offset = 0x4, fixed_abs, tag = 'smem constant byte address 0x4 - core index']
  #allocation1 [shape = 'u32[144,128]{1,0:T(1,128)}', space=vmem, size = 0x12000, scoped, tag = 'internal scratch']
  #allocation2 [shape = 's32[1]{0}', space=sflag, size = 0x4, scoped, tag = 'scoped memory for tpu_custom_call.1']
  #allocation3 [shape = 'u8[512]{0}', space=smem, size = 0x200, scoped, tag = 'prefetched SMEM operand 0']
  #allocation4 [shape = 'u8[512]{0}', space=smem, size = 0x200, scoped, tag = 'prefetched SMEM operand 1']
  %s0 = inlined_call_operand.hbm [shape: s32[2], index: 0, kind: input, shape index: {}]
  %s1 = inlined_call_operand.vmem [shape: s32[2], index: 1, kind: input, shape index: {}]
  %s2 = inlined_call_operand.vmem [shape: f32[2,1,96], index: 2, kind: input, shape index: {}]
  %s3 = inlined_call_operand.vmem [shape: f32[2,3,96], index: 3, kind: output, shape index: {}]
  %s4 = sld [smem:[#allocation0]]
  $region37: #{tpu_custom_call.1} parent=0
    _
  %s6 = ssub.s32 1, %s4
  %s7 = scalar_select 0, %s6, %s4
  %9 = dma.hbm_to_smem %s0, 16, [#allocation3], [#allocation2]
  %s10 = sshll.u32 %s1, 4
  %s11 = int_to_ptr.vmem [resolvable:$true] %s10
  %13 = dma.vmem_to_smem %s11, 16, [#allocation4], [#allocation2]
  %14 = dma.done [#allocation2], 32
  %15 = sfence
  loop: start=0, step=1, limit=4
  $region2: #{tpu_custom_call.1} parent=0 // loop_pre_header
    _
  $region3: #{tpu_custom_call.1} parent=0 // loop_header
    %s17 = sphi 0, %s21
    %p18 = scmp.ge.s32.totalorder %s17, 4
    %s24 = sphi 0, %s36
    %s25 = sphi 0, %s32
    %s26 = sphi 0, %s24
    %s27 = sphi 0, %s25
    %s28 = sphi 0, %s26
    %s29 = sphi 0, %s27
    %s41 = sphi 0, %s43
    %s44 = sphi 0, %s41
    %s45 = sphi 0, %s44
    %s61 = sphi 0, %s45
    %s69 = sphi 0, %s71
    %s72 = sphi 0, %s69
    %s73 = sphi 0, %s72
    %s89 = sphi 0, %s73
  $region4: #{tpu_custom_call.1} parent=0 // loop_header_branch
    %20 = sbr.rel (%p18) target = $region8
  $region5: #{tpu_custom_call.1} parent=0 // loop_body
    %s22 = ssub.s32 %s17, 1
    %s23 = ssub.s32 %s17, 2
    %s30 = sadd.s32 1, %s25
    %p31 = scmp.ge.s32.totalorder %s30, 1
    %s32 = scalar_select %p31, 0, %s30
    %s33 = sadd.s32 1, %s24
    %s34 = scalar_select %p31, %s33, %s24
    %p35 = scmp.ge.s32.totalorder %s34, 2
    %s36 = scalar_select %p35, 0, %s34
    %s37 = ssub.s32 %s24, %s36
    %s38 = ssub.s32 %s25, %s32
    %s39 = sor.u32 %s37, %s38
    %p40 = scmp.eq.s32.totalorder %s39, 0
    %s42 = sadd.s32 %s41, 1
    %s43 = scalar_select %p40, %s41, %s42
    %p46 = pneg %p40
    %p47 = scmp.eq.s32.totalorder %s17, 1
    %p48 = por %p46, %p47
    %p49 = scmp.ne.s32.totalorder %s41, %s44
    %p50 = scmp.eq.s32.totalorder %s17, 0
    %p51 = por %p49, %p50
    %p52 = scmp.ne.s32.totalorder %s41, %s44
    %p53 = scmp.eq.s32.totalorder %s22, 1
    %p54 = por %p52, %p53
    %p55 = scmp.ne.s32.totalorder %s44, %s45
    %p56 = scmp.eq.s32.totalorder %s22, 0
    %p57 = por %p55, %p56
    %p58 = scmp.ne.s32.totalorder %s44, %s45
    %p59 = scmp.eq.s32.totalorder %s23, 1
    %p60 = por %p58, %p59
    %p62 = scmp.ne.s32.totalorder %s45, %s61
    %p63 = scmp.eq.s32.totalorder %s23, 0
    %p64 = por %p62, %p63
    %s65 = ssub.s32 %s24, %s36
    %s66 = ssub.s32 %s25, %s32
    %s67 = sor.u32 %s65, %s66
    %p68 = scmp.eq.s32.totalorder %s67, 0
    %s70 = sadd.s32 %s69, 1
    %s71 = scalar_select %p68, %s69, %s70
    %p74 = pneg %p68
    %p75 = scmp.eq.s32.totalorder %s17, 1
    %p76 = por %p74, %p75
    %p77 = scmp.ne.s32.totalorder %s69, %s72
    %p78 = scmp.eq.s32.totalorder %s17, 0
    %p79 = por %p77, %p78
    %p80 = scmp.ne.s32.totalorder %s69, %s72
    %p81 = scmp.eq.s32.totalorder %s22, 1
    %p82 = por %p80, %p81
    %p83 = scmp.ne.s32.totalorder %s72, %s73
    %p84 = scmp.eq.s32.totalorder %s22, 0
    %p85 = por %p83, %p84
    %p86 = scmp.ne.s32.totalorder %s72, %s73
    %p87 = scmp.eq.s32.totalorder %s23, 1
    %p88 = por %p86, %p87
    %p90 = scmp.ne.s32.totalorder %s73, %s89
    %p91 = scmp.eq.s32.totalorder %s23, 0
    %p92 = por %p90, %p91
    %p93 = scmp.le.s32.totalorder 1, %s17
    %p94 = scmp.lt.s32.totalorder %s17, 3
    %p95 = pnand %p93, %p94
    %p96 = pneg %p95
    // Predicated region
    $region9: #{tpu_custom_call.1} parent=5 // pred_check
      _
    $region10: #{tpu_custom_call.1} parent=5 // pred_check_branch
      %98 = sbr.rel (%p95) target = $region12
    $region11: #{tpu_custom_call.1} parent=5 // pred_region
      %s99 = ssub.s32 %s17, 1
    $region12: #{tpu_custom_call.1} parent=5 // pred_fallthru
      _
    %p100 = scmp.lt.s32.totalorder %s17, 2
    // Predicated region
    $region13: #{tpu_custom_call.1} parent=5 // pred_check
      %p101 = pneg %p100
    $region14: #{tpu_custom_call.1} parent=5 // pred_check_branch
      %103 = sbr.rel (%p101) target = $region16
    $region15: #{tpu_custom_call.1} parent=5 // pred_region
      // Predicated region
      $region17: #{tpu_custom_call.1} parent=15 // pred_check
        %p104 = pneg %p51
      $region18: #{tpu_custom_call.1} parent=15 // pred_check_branch
        %106 = sbr.rel (%p104) target = $region20
      $region19: #{tpu_custom_call.1} parent=15 // pred_region
        %p107 = scmp.lt.s32.totalorder %s24, 1
        %s108 = scalar_select %p107, %s24, 1
        %p109 = scmp.lt.s32.totalorder %s25, 0
        %s110 = scalar_select %p109, %s25, 0
        %s111 = sadd.s32 %s110, %s108
        %s112 = scalar_lea.vmem %s2, %s111
      $region20: #{tpu_custom_call.1} parent=15 // pred_fallthru
        _
    $region16: #{tpu_custom_call.1} parent=5 // pred_fallthru
      _
    %p113 = scmp.le.s32.totalorder 1, %s17
    %p114 = scmp.lt.s32.totalorder %s17, 3
    %p115 = pnand %p113, %p114
    %p116 = pneg %p115
    // Predicated region
    $region21: #{tpu_custom_call.1} parent=5 // pred_check
      _
    $region22: #{tpu_custom_call.1} parent=5 // pred_check_branch
      %118 = sbr.rel (%p115) target = $region24
    $region23: #{tpu_custom_call.1} parent=5 // pred_region
      %s119 = ssub.s32 %s17, 1
      %p120 = scmp.lt.s32.totalorder %s26, 1
      %s121 = scalar_select %p120, %s26, 1
      %p122 = scmp.lt.s32.totalorder %s27, 0
      %s123 = scalar_select %p122, %s27, 0
      %s124 = sadd.s32 %s123, %s121
      %s125 = scalar_lea.vmem %s2, %s124
      %p126 = pneg %p57
      %p127 = pneg %p54
      %p128 = pneg %p85
      %p129 = pneg %p82
      %p130 = scmp.lt.s32.totalorder %s26, 1
      %s131 = scalar_select %p130, %s26, 1
      %p132 = scmp.lt.s32.totalorder %s27, 0
      %s133 = scalar_select %p132, %s27, 0
      %s134 = sadd.s32 %s133, %s131
      %s135 = smul.addr %s134, 4
      %s136 = scalar_lea.vmem %s3, %s135
      %p137 = scmp.lt.s32.totalorder %s26, 1
      %s138 = scalar_select %p137, %s26, 1
      %p139 = scmp.lt.s32.totalorder %s27, 0
      %s140 = scalar_select %p139, %s27, 0
      %s141 = sadd.s32 %s140, %s138
      %s142 = scalar_lea.vmem %s2, %s141
      %p143 = scmp.lt.s32.totalorder %s26, 1
      %s144 = scalar_select %p143, %s26, 1
      %p145 = scmp.lt.s32.totalorder %s27, 0
      %s146 = scalar_select %p145, %s27, 0
      %s147 = sadd.s32 %s146, %s144
      %s148 = smul.addr %s147, 4
      %s149 = scalar_lea.vmem %s3, %s148
      %v150 = vlaneseq
      %v151 = vand.u32 %v150, 127
      %s152 = smul.u32 %s27, 96
      %v153 = vstv %s152
      %v154 = vadd.s32 %v151, %v153
      %vm155 = vcmp.lt.s32.totalorder %v154, 0
      %v156 = vsub.s32 0, %v154
      %v157 = vsel %vm155, %v156, %v154
      %v158 = vmul.u32.u64.compose %v157, 2863311531
      %v159 = vextract.low.u32 %v158
      %v160 = vextract.high.u32 %v158
      %v161 = vshrl.u32 %v160, 3
      %v162 = vmul.u32 %v161, 12
      %v163 = vsub.s32 %v157, %v162
      %v164 = vsub.s32 0, %v163
      %v165 = vsel %vm155, %v164, %v163
      %vm166 = vcmp.ne.s32.totalorder %v165, 0
      %vm167 = vcmp.lt.s32.totalorder %v165, 0
      %vm168 = vmand %vm167, %vm166
      %v169 = vadd.s32 %v165, 12
      %v170 = vsel %vm168, %v169, %v165
      %v171 = vsub.s32 11, %v170
      %s172 = sld [smem:[#allocation3 + %s26]]
      %p173 = scmp.lt.s32.totalorder %s172, 0
      %s174 = ssub.s32 0, %s172
      %s175 = scalar_select %p173, %s174, %s172
      %s176 = sdiv.u32.pop %s175, 288
      %s177 = srem.u32.pop %s175, 288
      %s178 = ssub.s32 0, %s177
      %s179 = scalar_select %p173, %s178, %s177
      %p180 = scmp.ne.s32.totalorder %s179, 0
      %p181 = scmp.lt.s32.totalorder %s179, 0
      %p182 = pnand %p181, %p180
      %p183 = pneg %p182
      %s184 = sadd.s32 %s179, 288
      %s185 = scalar_select %p183, %s184, %s179
      %s186 = sld [smem:[#allocation4 + %s26]]
      %p187 = scmp.lt.s32.totalorder %s186, 0
      %s188 = ssub.s32 0, %s186
      %s189 = scalar_select %p187, %s188, %s186
      %s190 = sdiv.u32.pop %s189, 7
      %s191 = srem.u32.pop %s189, 7
      %s192 = ssub.s32 0, %s191
      %s193 = scalar_select %p187, %s192, %s191
      %p194 = scmp.ne.s32.totalorder %s193, 0
      %p195 = scmp.lt.s32.totalorder %s193, 0
      %p196 = pnand %p195, %p194
      %p197 = pneg %p196
      %s198 = sadd.s32 %s193, 7
      %s199 = scalar_select %p197, %s198, %s193
      %s200 = sadd.s32 %s185, 288
      %v201 = vstv %s200
      %v202 = vsub.s32 %v201, %v171
      %vm203 = vcmp.ge.s32.totalorder %v202, 288
      %v204 = vsub.s32 %v202, 288
      %v205 = vsel %vm203, %v204, %v202
      %v206 = vcvt.s32.f32 %v205
      %v207 = vmul.f32 %v206, 0.0034722222
      %v208 = vstv %s172
      %v209 = vsub.s32 %v208, %v171
      %vm210 = vcmp.lt.s32.totalorder %v209, 0
      %v211 = vsel %vm210, 1, 0
      %s212 = sadd.s32 %s199, 7
      %v213 = vstv %s212
      %v214 = vsub.s32 %v213, %v211
      %vm215 = vcmp.ge.s32.totalorder %v214, 7
      %v216 = vsub.s32 %v214, 7
      %v217 = vsel %vm215, %v216, %v214
      %v218 = vcvt.s32.f32 %v217
      %v219 = vmul.f32 %v218, 0.14285715
      %v220 = vld [vmem:[%s142] sm:$0x1]
      %vm221 = vcmask 778240
      %222 = vst.msk [vmem:[%s149] sm:$0x1] %vm221, %v220
      %223 = vst.msk [vmem:[%s149 + $0x1] sm:$0x1] %vm221, %v207
      %224 = vst.msk [vmem:[%s149 + $0x2] sm:$0x1] %vm221, %v219
      %p225 = scmp.lt.s32.totalorder %s26, 1
      %s226 = scalar_select %p225, %s26, 1
      %p227 = scmp.lt.s32.totalorder %s27, 0
      %s228 = scalar_select %p227, %s27, 0
      %s229 = sadd.s32 %s228, %s226
      %s230 = smul.addr %s229, 4
      %s231 = scalar_lea.vmem %s3, %s230
      // Predicated region
      $region25: #{tpu_custom_call.1} parent=23 // pred_check
        %p232 = pneg %p82
      $region26: #{tpu_custom_call.1} parent=23 // pred_check_branch
        %234 = sbr.rel (%p232) target = $region28
      $region27: #{tpu_custom_call.1} parent=23 // pred_region
        _
      $region28: #{tpu_custom_call.1} parent=23 // pred_fallthru
        _
    $region24: #{tpu_custom_call.1} parent=5 // pred_fallthru
      _
    %p235 = scmp.le.s32.totalorder 2, %s17
    // Predicated region
    $region29: #{tpu_custom_call.1} parent=5 // pred_check
      %p236 = pneg %p235
    $region30: #{tpu_custom_call.1} parent=5 // pred_check_branch
      %238 = sbr.rel (%p236) target = $region32
    $region31: #{tpu_custom_call.1} parent=5 // pred_region
      %s239 = ssub.s32 %s17, 2
      // Predicated region
      $region33: #{tpu_custom_call.1} parent=31 // pred_check
        %p240 = pneg %p88
      $region34: #{tpu_custom_call.1} parent=31 // pred_check_branch
        %242 = sbr.rel (%p240) target = $region36
      $region35: #{tpu_custom_call.1} parent=31 // pred_region
        %p243 = scmp.lt.s32.totalorder %s28, 1
        %s244 = scalar_select %p243, %s28, 1
        %p245 = scmp.lt.s32.totalorder %s29, 0
        %s246 = scalar_select %p245, %s29, 0
        %s247 = sadd.s32 %s246, %s244
        %s248 = smul.addr %s247, 4
        %s249 = scalar_lea.vmem %s3, %s248
      $region36: #{tpu_custom_call.1} parent=31 // pred_fallthru
        _
    $region32: #{tpu_custom_call.1} parent=5 // pred_fallthru
      _
  $region6: #{tpu_custom_call.1} parent=0 // loop_footer
    %s21 = sadd.s32 1, %s17
  $region7: #{tpu_custom_call.1} parent=0 // loop_footer_branch
    %16 = sbr.rel target = $region3
  $region8: #{tpu_custom_call.1} parent=0 // loop_exit
    _

</llo_original>
